<compile_context>
chip_gen: v7x
topology: tpu7x:2x2x1
jax: 0.10.0
libtpu: 0.0.40
codegen_flags: <defaults>
</compile_context>

<pallas_src>
import jax
import jax.numpy as jnp
from jax.experimental import pallas as pl
from jax.experimental.pallas import tpu as pltpu


HIDDEN = 256
OUT_PAD = 8            # fc3 output stored 8 lanes wide; column 0 holds the value
BATCH_TILE = 2048      # batch tile for large (training-sized) batches
_SINGLE_TILE_MAX = 256 # batches up to this size run as one block


def _critic_kernel(d1_ref, d2_ref, w1a_ref, w1b_ref, b1_ref,
                   w2_ref, b2_ref, w3_ref, b3_ref, out_ref):
    """One batch tile of the critic MLP, fully resident in VMEM.

    d1_ref : [TB, D1] f32       d2_ref : [TB, D2] f32   (D2 = n_actions, tiny)
    w1a_ref: [D1, 256] bf16     w1b_ref: [D2, 256] f32  b1_ref: [1, 256] f32
    w2_ref : [256, 256] bf16    b2_ref : [1, 256] f32
    w3_ref : [256, 8] bf16 (zero-padded from [256, 1])
    b3_ref : [1, 8]   f32  (zero-padded from [1, 1])
    out_ref: [TB, 8]  f32  (column 0 holds the value)
    """
    # fc1, state part: bf16 MXU matmul with f32 accumulation (cast in-kernel).
    h1 = (jnp.dot(d1_ref[...].astype(jnp.bfloat16), w1a_ref[...],
                  preferred_element_type=jnp.float32)
          + b1_ref[...])

    # fc1, action part: K = n_actions is tiny, so do rank-1 updates on the VPU
    # in f32 instead of burning a full extra MXU pass (concat fused, no HBM).
    d2 = d2_ref[...]                     # [TB, D2] f32
    w1b = w1b_ref[...]                   # [D2, 256] f32
    for k in range(d2_ref.shape[1]):     # static trip count
        h1 = h1 + d2[:, k:k + 1] * w1b[k:k + 1, :]

    h1 = jnp.maximum(h1, 0.0).astype(jnp.bfloat16)

    # fc2 + ReLU (bias add / ReLU in f32, bf16 feed to the next MXU op).
    h2 = jnp.dot(h1, w2_ref[...], preferred_element_type=jnp.float32) + b2_ref[...]
    h2 = jnp.maximum(h2, 0.0).astype(jnp.bfloat16)

    # fc3: narrow 8-lane output block (full last dim of the output array).
    out_ref[...] = (jnp.dot(h2, w3_ref[...], preferred_element_type=jnp.float32)
                    + b3_ref[...])


def _round_up(x, m):
    return ((x + m - 1) // m) * m


def prepare_critic_params(params, d1_features):
    """Pre-cast / pre-pad weights once (call outside the hot loop).

    Returns kernel-ready params:
      (w1a bf16 [D1,256], w1b f32 [D2,256], b1 f32 [1,256],
       w2 bf16 [256,256], b2 f32 [1,256],
       w3 bf16 [256,8] zero-padded, b3 f32 [1,8] zero-padded)
    """
    w1, b1, w2, b2, w3, b3 = params
    w1a = jnp.asarray(w1[:d1_features], jnp.float32).astype(jnp.bfloat16)
    w1b = jnp.asarray(w1[d1_features:], jnp.float32)
    b1f = jnp.asarray(b1, jnp.float32).reshape(1, HIDDEN)
    w2b = jnp.asarray(w2, jnp.float32).astype(jnp.bfloat16)
    b2f = jnp.asarray(b2, jnp.float32).reshape(1, HIDDEN)
    w3p = jnp.pad(jnp.asarray(w3, jnp.float32),
                  ((0, 0), (0, OUT_PAD - w3.shape[1]))).astype(jnp.bfloat16)
    b3p = jnp.pad(jnp.asarray(b3, jnp.float32).reshape(1, -1),
                  ((0, 0), (0, OUT_PAD - b3.shape[1])))
    return (w1a, w1b, b1f, w2b, b2f, w3p, b3p)


@jax.jit
def critic_forward_prepared(data1, data2, prep):
    """Critic forward with pre-prepared params."""
    w1a, w1b, b1f, w2b, b2f, w3p, b3p = prep
    b = data1.shape[0]
    d1f = data1.shape[1]          # 2 * input_dims
    d2f = data2.shape[1]          # n_actions

    d1 = data1.astype(jnp.float32)   # bf16 cast happens inside the kernel
    d2 = data2.astype(jnp.float32)

    # Batch tiling: one block for small batches; otherwise >= 2 tiles (so the
    # "parallel" axis can use both TCs on v7x), capped at BATCH_TILE rows.
    if b <= _SINGLE_TILE_MAX:
        tb, b_pad = b, b
    else:
        tb = min(BATCH_TILE, _round_up(-(-b // 2), 256))
        b_pad = _round_up(b, tb)
    if b_pad != b:
        d1 = jnp.pad(d1, ((0, b_pad - b), (0, 0)))
        d2 = jnp.pad(d2, ((0, b_pad - b), (0, 0)))
    num_tiles = b_pad // tb

    row = lambda shape: pl.BlockSpec(shape, lambda i: (i, 0))   # tiled along batch
    rep = lambda shape: pl.BlockSpec(shape, lambda i: (0, 0))   # VMEM-resident weights

    out = pl.pallas_call(
        _critic_kernel,
        out_shape=jax.ShapeDtypeStruct((b_pad, OUT_PAD), jnp.float32),
        grid=(num_tiles,),
        in_specs=[
            row((tb, d1f)), row((tb, d2f)),
            rep((d1f, HIDDEN)), rep((d2f, HIDDEN)), rep((1, HIDDEN)),
            rep((HIDDEN, HIDDEN)), rep((1, HIDDEN)),
            rep((HIDDEN, OUT_PAD)), rep((1, OUT_PAD)),
        ],
        out_specs=row((tb, OUT_PAD)),
        compiler_params=pltpu.CompilerParams(
            dimension_semantics=("parallel",),   # shard batch tiles across TCs (v7x)
            vmem_limit_bytes=32 << 20,           # covers f32 [tb,256] intermediates
        ),
    )(d1, d2, w1a, w1b, b1f, w2b, b2f, w3p, b3p)

    return out[:b, :1]


def critic_forward(data1, data2, params):
    """Convenience wrapper: value = fc3(relu(fc2(relu(fc1([data1, data2])))))."""
    prep = prepare_critic_params(params, data1.shape[1])
    return critic_forward_prepared(data1, data2, prep)


def init_critic_params(key, input_dims, n_actions):
    """Deterministic init mimicking torch.nn.Linear default (U[-1/sqrt(fan_in), +]).

    Weights are stored as [in_features, out_features] (transposed vs. torch)."""
    d_in = 2 * input_dims + n_actions
    ks = jax.random.split(key, 6)

    def linear(kw, kb, fan_in, fan_out):
        bound = 1.0 / jnp.sqrt(jnp.float32(fan_in))
        w = jax.random.uniform(kw, (fan_in, fan_out), jnp.float32, -bound, bound)
        bias = jax.random.uniform(kb, (1, fan_out), jnp.float32, -bound, bound)
        return w, bias

    w1, b1 = linear(ks[0], ks[1], d_in, HIDDEN)
    w2, b2 = linear(ks[2], ks[3], HIDDEN, HIDDEN)
    w3, b3 = linear(ks[4], ks[5], HIDDEN, 1)
    return (w1, b1, w2, b2, w3, b3)


if __name__ == "__main__":
    key = jax.random.PRNGKey(0)
    k_params, k_d1, k_d2 = jax.random.split(key, 3)

    # Small shapes consistent with the module: input_dims=8, n_actions=4, batch=2.
    input_dims, n_actions, batch = 8, 4, 2
    params = init_critic_params(k_params, input_dims, n_actions)

    data1 = jax.random.normal(k_d1, (batch, 2 * input_dims), jnp.float32)  # state(+goal)
    data2 = jax.random.normal(k_d2, (batch, n_actions), jnp.float32)       # action

    value = critic_forward(data1, data2, params)
    value = jax.block_until_ready(value)

    # Reference checks.  The kernel uses bf16 MXU matmuls with f32 accumulation
    # (and an f32 VPU path for the action columns of fc1), so compare against
    # (a) a precision-matched reference tightly and (b) pure f32 loosely.
    w1, b1, w2, b2, w3, b3 = params
    d1f = data1.shape[1]

    h1m = (jnp.dot(data1.astype(jnp.bfloat16), w1[:d1f].astype(jnp.bfloat16),
                   preferred_element_type=jnp.float32)
           + data2 @ w1[d1f:] + b1)
    h1m = jnp.maximum(h1m, 0.0).astype(jnp.bfloat16)
    h2m = jnp.maximum(jnp.dot(h1m, w2.astype(jnp.bfloat16),
                              preferred_element_type=jnp.float32) + b2,
                      0.0).astype(jnp.bfloat16)
    ref_mixed = jnp.dot(h2m, w3.astype(jnp.bfloat16),
                        preferred_element_type=jnp.float32) + b3

    x = jnp.concatenate([data1, data2], axis=1)
    h1 = jnp.maximum(x @ w1 + b1, 0.0)
    h2 = jnp.maximum(h1 @ w2 + b2, 0.0)
    ref_f32 = h2 @ w3 + b3

    assert value.shape == (batch, 1)
    assert jnp.allclose(value, ref_mixed, atol=1e-2, rtol=1e-2)
    assert jnp.allclose(value, ref_f32, atol=5e-2, rtol=5e-2)
    print("KERNEL_OK")
</pallas_src>

<mosaic_0001>
module attributes {stable_mosaic.version = 11 : i64} {
  func.func @_critic_kernel(%arg0: i32, %arg1: memref<2x16xf32, #tpu.memory_space<vmem>>, %arg2: memref<2x4xf32, #tpu.memory_space<vmem>>, %arg3: memref<16x256xbf16, #tpu.memory_space<vmem>>, %arg4: memref<4x256xf32, #tpu.memory_space<vmem>>, %arg5: memref<1x256xf32, #tpu.memory_space<vmem>>, %arg6: memref<256x256xbf16, #tpu.memory_space<vmem>>, %arg7: memref<1x256xf32, #tpu.memory_space<vmem>>, %arg8: memref<256x8xbf16, #tpu.memory_space<vmem>>, %arg9: memref<1x8xf32, #tpu.memory_space<vmem>>, %arg10: memref<2x8xf32, #tpu.memory_space<vmem>>) attributes {dimension_semantics = [#tpu.dimension_semantics<parallel>], iteration_bounds = array<i64: 1>, scalar_prefetch = 0 : i64, scratch_operands = 0 : i64, tpu.core_type = #tpu.core_type<tc>, window_params = [{transform_indices = @transform_0, window_bounds = array<i64: 2, 16>}, {transform_indices = @transform_1, window_bounds = array<i64: 2, 4>}, {pipeline_mode = #tpu.pipeline_mode<synchronous>, transform_indices = @transform_2, window_bounds = array<i64: 16, 256>}, {pipeline_mode = #tpu.pipeline_mode<synchronous>, transform_indices = @transform_3, window_bounds = array<i64: 4, 256>}, {pipeline_mode = #tpu.pipeline_mode<synchronous>, transform_indices = @transform_4, window_bounds = array<i64: 1, 256>}, {pipeline_mode = #tpu.pipeline_mode<synchronous>, transform_indices = @transform_5, window_bounds = array<i64: 256, 256>}, {pipeline_mode = #tpu.pipeline_mode<synchronous>, transform_indices = @transform_6, window_bounds = array<i64: 1, 256>}, {pipeline_mode = #tpu.pipeline_mode<synchronous>, transform_indices = @transform_7, window_bounds = array<i64: 256, 8>}, {pipeline_mode = #tpu.pipeline_mode<synchronous>, transform_indices = @transform_8, window_bounds = array<i64: 1, 8>}, {transform_indices = @transform_9, window_bounds = array<i64: 2, 8>}]} {
    %c0 = arith.constant 0 : index
    %c0_0 = arith.constant 0 : index
    %0 = vector.load %arg1[%c0, %c0_0] : memref<2x16xf32, #tpu.memory_space<vmem>>, vector<2x16xf32>
    %1 = arith.truncf %0 : vector<2x16xf32> to vector<2x16xbf16>
    %c0_1 = arith.constant 0 : index
    %c0_2 = arith.constant 0 : index
    %2 = vector.load %arg3[%c0_1, %c0_2] : memref<16x256xbf16, #tpu.memory_space<vmem>>, vector<16x256xbf16>
    %cst = arith.constant dense<0.000000e+00> : vector<2x256xf32>
    %3 = tpu.matmul %1, %2, %cst {dimension_numbers = #tpu.dot_dimension_numbers<[1], [0], [0], [1], [0, 0, 1, 1], [], []>} : vector<2x16xbf16>, vector<16x256xbf16>, vector<2x256xf32> -> vector<2x256xf32>
    %c0_3 = arith.constant 0 : index
    %c0_4 = arith.constant 0 : index
    %4 = vector.load %arg5[%c0_3, %c0_4] : memref<1x256xf32, #tpu.memory_space<vmem>>, vector<1x256xf32>
    %5 = vector.broadcast %4 : vector<1x256xf32> to vector<2x256xf32>
    %6 = arith.addf %3, %5 : vector<2x256xf32>
    %c0_5 = arith.constant 0 : index
    %c0_6 = arith.constant 0 : index
    %7 = vector.load %arg2[%c0_5, %c0_6] : memref<2x4xf32, #tpu.memory_space<vmem>>, vector<2x4xf32>
    %c0_7 = arith.constant 0 : index
    %c0_8 = arith.constant 0 : index
    %8 = vector.load %arg4[%c0_7, %c0_8] : memref<4x256xf32, #tpu.memory_space<vmem>>, vector<4x256xf32>
    %9 = vector.extract_strided_slice %7 {offsets = [0, 0], sizes = [2, 1], strides = [1, 1]} : vector<2x4xf32> to vector<2x1xf32>
    %10 = vector.extract_strided_slice %8 {offsets = [0, 0], sizes = [1, 256], strides = [1, 1]} : vector<4x256xf32> to vector<1x256xf32>
    %11 = vector.broadcast %9 : vector<2x1xf32> to vector<2x256xf32>
    %12 = vector.broadcast %10 : vector<1x256xf32> to vector<2x256xf32>
    %13 = arith.mulf %11, %12 : vector<2x256xf32>
    %14 = arith.addf %6, %13 : vector<2x256xf32>
    %15 = vector.extract_strided_slice %7 {offsets = [0, 1], sizes = [2, 1], strides = [1, 1]} : vector<2x4xf32> to vector<2x1xf32>
    %16 = vector.extract_strided_slice %8 {offsets = [1, 0], sizes = [1, 256], strides = [1, 1]} : vector<4x256xf32> to vector<1x256xf32>
    %17 = vector.broadcast %15 : vector<2x1xf32> to vector<2x256xf32>
    %18 = vector.broadcast %16 : vector<1x256xf32> to vector<2x256xf32>
    %19 = arith.mulf %17, %18 : vector<2x256xf32>
    %20 = arith.addf %14, %19 : vector<2x256xf32>
    %21 = vector.extract_strided_slice %7 {offsets = [0, 2], sizes = [2, 1], strides = [1, 1]} : vector<2x4xf32> to vector<2x1xf32>
    %22 = vector.extract_strided_slice %8 {offsets = [2, 0], sizes = [1, 256], strides = [1, 1]} : vector<4x256xf32> to vector<1x256xf32>
    %23 = vector.broadcast %21 : vector<2x1xf32> to vector<2x256xf32>
    %24 = vector.broadcast %22 : vector<1x256xf32> to vector<2x256xf32>
    %25 = arith.mulf %23, %24 : vector<2x256xf32>
    %26 = arith.addf %20, %25 : vector<2x256xf32>
    %27 = vector.extract_strided_slice %7 {offsets = [0, 3], sizes = [2, 1], strides = [1, 1]} : vector<2x4xf32> to vector<2x1xf32>
    %28 = vector.extract_strided_slice %8 {offsets = [3, 0], sizes = [1, 256], strides = [1, 1]} : vector<4x256xf32> to vector<1x256xf32>
    %29 = vector.broadcast %27 : vector<2x1xf32> to vector<2x256xf32>
    %30 = vector.broadcast %28 : vector<1x256xf32> to vector<2x256xf32>
    %31 = arith.mulf %29, %30 : vector<2x256xf32>
    %32 = arith.addf %26, %31 : vector<2x256xf32>
    %cst_9 = arith.constant 0.000000e+00 : f32
    %33 = vector.broadcast %cst_9 : f32 to vector<2x256xf32>
    %34 = arith.maximumf %32, %33 : vector<2x256xf32>
    %35 = arith.truncf %34 : vector<2x256xf32> to vector<2x256xbf16>
    %c0_10 = arith.constant 0 : index
    %c0_11 = arith.constant 0 : index
    %36 = vector.load %arg6[%c0_10, %c0_11] : memref<256x256xbf16, #tpu.memory_space<vmem>>, vector<256x256xbf16>
    %cst_12 = arith.constant dense<0.000000e+00> : vector<2x256xf32>
    %37 = tpu.matmul %35, %36, %cst_12 {dimension_numbers = #tpu.dot_dimension_numbers<[1], [0], [0], [1], [0, 0, 1, 1], [], []>} : vector<2x256xbf16>, vector<256x256xbf16>, vector<2x256xf32> -> vector<2x256xf32>
    %c0_13 = arith.constant 0 : index
    %c0_14 = arith.constant 0 : index
    %38 = vector.load %arg7[%c0_13, %c0_14] : memref<1x256xf32, #tpu.memory_space<vmem>>, vector<1x256xf32>
    %39 = vector.broadcast %38 : vector<1x256xf32> to vector<2x256xf32>
    %40 = arith.addf %37, %39 : vector<2x256xf32>
    %cst_15 = arith.constant 0.000000e+00 : f32
    %41 = vector.broadcast %cst_15 : f32 to vector<2x256xf32>
    %42 = arith.maximumf %40, %41 : vector<2x256xf32>
    %43 = arith.truncf %42 : vector<2x256xf32> to vector<2x256xbf16>
    %c0_16 = arith.constant 0 : index
    %c0_17 = arith.constant 0 : index
    %44 = vector.load %arg8[%c0_16, %c0_17] : memref<256x8xbf16, #tpu.memory_space<vmem>>, vector<256x8xbf16>
    %cst_18 = arith.constant dense<0.000000e+00> : vector<2x8xf32>
    %45 = tpu.matmul %43, %44, %cst_18 {dimension_numbers = #tpu.dot_dimension_numbers<[1], [0], [0], [1], [0, 0, 1, 1], [], []>} : vector<2x256xbf16>, vector<256x8xbf16>, vector<2x8xf32> -> vector<2x8xf32>
    %c0_19 = arith.constant 0 : index
    %c0_20 = arith.constant 0 : index
    %46 = vector.load %arg9[%c0_19, %c0_20] : memref<1x8xf32, #tpu.memory_space<vmem>>, vector<1x8xf32>
    %47 = vector.broadcast %46 : vector<1x8xf32> to vector<2x8xf32>
    %48 = arith.addf %45, %47 : vector<2x8xf32>
    %c0_21 = arith.constant 0 : index
    %c0_22 = arith.constant 0 : index
    %49 = vector.load %arg10[%c0_21, %c0_22] : memref<2x8xf32, #tpu.memory_space<vmem>>, vector<2x8xf32>
    tpu.vector_store %arg10[%c0_21, %c0_22], %48 {strides = array<i32>} : memref<2x8xf32, #tpu.memory_space<vmem>>, vector<2x8xf32>,
    return
  }
  func.func @transform_0(%arg0: i32) -> (i32, i32) {
    %c0_i32 = arith.constant 0 : i32
    %c0_i32_0 = arith.constant 0 : i32
    return %arg0, %c0_i32 : i32, i32
  }
  func.func @transform_1(%arg0: i32) -> (i32, i32) {
    %c0_i32 = arith.constant 0 : i32
    %c0_i32_0 = arith.constant 0 : i32
    return %arg0, %c0_i32 : i32, i32
  }
  func.func @transform_2(%arg0: i32) -> (i32, i32) {
    %c0_i32 = arith.constant 0 : i32
    %c0_i32_0 = arith.constant 0 : i32
    %c0_i32_1 = arith.constant 0 : i32
    return %c0_i32, %c0_i32_0 : i32, i32
  }
  func.func @transform_3(%arg0: i32) -> (i32, i32) {
    %c0_i32 = arith.constant 0 : i32
    %c0_i32_0 = arith.constant 0 : i32
    %c0_i32_1 = arith.constant 0 : i32
    return %c0_i32, %c0_i32_0 : i32, i32
  }
  func.func @transform_4(%arg0: i32) -> (i32, i32) {
    %c0_i32 = arith.constant 0 : i32
    %c0_i32_0 = arith.constant 0 : i32
    %c0_i32_1 = arith.constant 0 : i32
    return %c0_i32, %c0_i32_0 : i32, i32
  }
  func.func @transform_5(%arg0: i32) -> (i32, i32) {
    %c0_i32 = arith.constant 0 : i32
    %c0_i32_0 = arith.constant 0 : i32
    %c0_i32_1 = arith.constant 0 : i32
    return %c0_i32, %c0_i32_0 : i32, i32
  }
  func.func @transform_6(%arg0: i32) -> (i32, i32) {
    %c0_i32 = arith.constant 0 : i32
    %c0_i32_0 = arith.constant 0 : i32
    %c0_i32_1 = arith.constant 0 : i32
    return %c0_i32, %c0_i32_0 : i32, i32
  }
  func.func @transform_7(%arg0: i32) -> (i32, i32) {
    %c0_i32 = arith.constant 0 : i32
    %c0_i32_0 = arith.constant 0 : i32
    %c0_i32_1 = arith.constant 0 : i32
    return %c0_i32, %c0_i32_0 : i32, i32
  }
  func.func @transform_8(%arg0: i32) -> (i32, i32) {
    %c0_i32 = arith.constant 0 : i32
    %c0_i32_0 = arith.constant 0 : i32
    %c0_i32_1 = arith.constant 0 : i32
    return %c0_i32, %c0_i32_0 : i32, i32
  }
  func.func @transform_9(%arg0: i32) -> (i32, i32) {
    %c0_i32 = arith.constant 0 : i32
    %c0_i32_0 = arith.constant 0 : i32
    return %arg0, %c0_i32 : i32, i32
  }
}

</mosaic_0001>

<llo_original>
// kernel: critic_forward_prepared.1
$region0: #{critic_forward_prepared.1}
  #allocation0 [shape = 'u32[]', space=smem, size = 0x4, offset = 0x4, fixed_abs, tag = 'smem constant byte address 0x4 - core index']
  #allocation1 [shape = 'u32[144,128]{1,0:T(1,128)}', space=vmem, size = 0x12000, scoped, tag = 'internal scratch']
  %s0 = inlined_call_operand.vmem [shape: f32[2,16], index: 0, kind: input, shape index: {}]
  %s1 = inlined_call_operand.vmem [shape: f32[2,4], index: 1, kind: input, shape index: {}]
  %s2 = inlined_call_operand.vmem [shape: bf16[16,256], index: 2, kind: input, shape index: {}]
  %s3 = inlined_call_operand.vmem [shape: f32[4,256], index: 3, kind: input, shape index: {}]
  %s4 = inlined_call_operand.vmem [shape: f32[1,256], index: 4, kind: input, shape index: {}]
  %s5 = inlined_call_operand.hbm [shape: bf16[256,256], index: 5, kind: input, shape index: {}]
  %s6 = inlined_call_operand.vmem [shape: f32[1,256], index: 6, kind: input, shape index: {}]
  %s7 = inlined_call_operand.vmem [shape: bf16[256,8], index: 7, kind: input, shape index: {}]
  %s8 = inlined_call_operand.vmem [shape: f32[1,8], index: 8, kind: input, shape index: {}]
  %s9 = inlined_call_operand.vmem [shape: f32[2,8], index: 9, kind: output, shape index: {}]
  %s10 = sld [smem:[#allocation0]]
  $region50: #{critic_forward_prepared.1} parent=0
    _
  %s12 = ssub.s32 1, %s10
  %s13 = scalar_select 0, %s12, %s10
  $region1: #{critic_forward_prepared.1} parent=0
    #allocation2 [shape = 'u8[131072]{0}', space=vmem, size = 0x20000, scoped, tag = 'input window, operand 5, single buffered']
    #allocation3 [shape = 's32[1]{0}', space=sflag, size = 0x4, scoped, tag = 'scoped memory for critic_forward_prepared.1']
    %14 = vsyncpa [#allocation3], 0
    // Predicated region
    $region2: #{critic_forward_prepared.1} parent=1 // pred_check
      _
    $region3: #{critic_forward_prepared.1} parent=1 // pred_check_branch
      %16 = sbr.rel (0) target = $region5
    $region4: #{critic_forward_prepared.1} parent=1 // pred_region
      _
    $region5: #{critic_forward_prepared.1} parent=1 // pred_fallthru
      _
    // Predicated region
    $region6: #{critic_forward_prepared.1} parent=1 // pred_check
      _
    $region7: #{critic_forward_prepared.1} parent=1 // pred_check_branch
      %18 = sbr.rel (0) target = $region9
    $region8: #{critic_forward_prepared.1} parent=1 // pred_region
      _
    $region9: #{critic_forward_prepared.1} parent=1 // pred_fallthru
      _
    // Predicated region
    $region10: #{critic_forward_prepared.1} parent=1 // pred_check
      _
    $region11: #{critic_forward_prepared.1} parent=1 // pred_check_branch
      %20 = sbr.rel (0) target = $region13
    $region12: #{critic_forward_prepared.1} parent=1 // pred_region
      _
    $region13: #{critic_forward_prepared.1} parent=1 // pred_fallthru
      _
    // Predicated region
    $region14: #{critic_forward_prepared.1} parent=1 // pred_check
      _
    $region15: #{critic_forward_prepared.1} parent=1 // pred_check_branch
      %22 = sbr.rel (0) target = $region17
    $region16: #{critic_forward_prepared.1} parent=1 // pred_region
      _
    $region17: #{critic_forward_prepared.1} parent=1 // pred_fallthru
      _
    // Predicated region
    $region18: #{critic_forward_prepared.1} parent=1 // pred_check
      _
    $region19: #{critic_forward_prepared.1} parent=1 // pred_check_branch
      %24 = sbr.rel (0) target = $region21
    $region20: #{critic_forward_prepared.1} parent=1 // pred_region
      _
    $region21: #{critic_forward_prepared.1} parent=1 // pred_fallthru
      _
    // Predicated region
    $region22: #{critic_forward_prepared.1} parent=1 // pred_check
      _
    $region23: #{critic_forward_prepared.1} parent=1 // pred_check_branch
      %26 = sbr.rel (0) target = $region25
    $region24: #{critic_forward_prepared.1} parent=1 // pred_region
      %s28 = ssub.s32 4096, 4096
      %29 = vsyncadd [#allocation3], %s28
      %s30 = sshll.u32 [#allocation2], 4
      %s31 = int_to_ptr.vmem [resolvable:$true] %s30
      %36 = dma.hbm_to_vmem [thread:$0]  %s5, 4096, %s31, [#allocation3], 128, 128, 8
    $region25: #{critic_forward_prepared.1} parent=1 // pred_fallthru
      _
    // Predicated region
    $region26: #{critic_forward_prepared.1} parent=1 // pred_check
      _
    $region27: #{critic_forward_prepared.1} parent=1 // pred_check_branch
      %38 = sbr.rel (0) target = $region29
    $region28: #{critic_forward_prepared.1} parent=1 // pred_region
      _
    $region29: #{critic_forward_prepared.1} parent=1 // pred_fallthru
      _
    // Predicated region
    $region30: #{critic_forward_prepared.1} parent=1 // pred_check
      _
    $region31: #{critic_forward_prepared.1} parent=1 // pred_check_branch
      %40 = sbr.rel (0) target = $region33
    $region32: #{critic_forward_prepared.1} parent=1 // pred_region
      _
    $region33: #{critic_forward_prepared.1} parent=1 // pred_fallthru
      _
    // Predicated region
    $region34: #{critic_forward_prepared.1} parent=1 // pred_check
      _
    $region35: #{critic_forward_prepared.1} parent=1 // pred_check_branch
      %42 = sbr.rel (0) target = $region37
    $region36: #{critic_forward_prepared.1} parent=1 // pred_region
      _
    $region37: #{critic_forward_prepared.1} parent=1 // pred_fallthru
      _
    // Predicated region
    $region38: #{critic_forward_prepared.1} parent=1 // pred_check
      _
    $region39: #{critic_forward_prepared.1} parent=1 // pred_check_branch
      %44 = sbr.rel (0) target = $region41
    $region40: #{critic_forward_prepared.1} parent=1 // pred_region
      %45 = dma.done [#allocation3], 4096
    $region41: #{critic_forward_prepared.1} parent=1 // pred_fallthru
      _
    %v47 = vld [vmem:[%s0] sm:$0x3]
    %v48 = vpack.c.bf16 %v47, %v47
    %v49 = vld [vmem:[%s2] sm:$0xff]
    %v50 = vld [vmem:[%s2 + $0x8] sm:$0xff]
    %v51 = vld [vmem:[%s4] sm:$0x3]
    %v53 = vlaneseq
    %v54 = vshrl.u32 %v53, 7
    %v55 = vsub.s32 0, %v54
    %v56 = vrot.slane %v51, %v55
    %v57 = vlaneseq
    %v58 = vshrl.u32 %v57, 7
    %v59 = vsub.s32 1, %v58
    %v60 = vrot.slane %v51, %v59
    %v65 = vunpack.c.l.b16 %v49
    %v66 = vunpack.c.h.b16 %v49
    %v67 = vunpack.c.l.b16 %v50
    %v68 = vunpack.c.h.b16 %v50
    %v69 = vpack.c.b16 %v67, %v65
    %v70 = vpack.c.b16 %v68, %v66
    %vm73 = vcmask 130048
    %v75 = vsel %vm73, %v48, 0
    %77 = vmatprep.subr.bf16.mxu0 %v70
    %78 = vmatpush1.bf16.msra.mxu0 %v69
    %79 = vmatprep.subr.bf16.mxu0 0
    %80 = vmatpush1.bf16.msra.mxu0 0
    %81 = vmatprep.subr.bf16.mxu0 0
    %82 = vmatpush1.bf16.msra.mxu0 0
    %83 = vmatprep.subr.bf16.mxu0 0
    %84 = vmatpush1.bf16.msra.mxu0 0
    %85 = vmatprep.subr.bf16.mxu0 0
    %86 = vmatpush1.bf16.msra.mxu0 0
    %87 = vmatprep.subr.bf16.mxu0 0
    %88 = vmatpush1.bf16.msra.mxu0 0
    %89 = vmatprep.subr.bf16.mxu0 0
    %90 = vmatpush1.bf16.msra.mxu0 0
    %91 = vmatprep.subr.bf16.mxu0 0
    %92 = vmatpush1.bf16.msra.mxu0 0
    %93 = vmatprep.subr.bf16.mxu0 0
    %94 = vmatpush1.bf16.msra.mxu0 0
    %95 = vmatprep.subr.bf16.mxu0 0
    %96 = vmatpush1.bf16.msra.mxu0 0
    %97 = vmatprep.subr.bf16.mxu0 0
    %98 = vmatpush1.bf16.msra.mxu0 0
    %99 = vmatprep.subr.bf16.mxu0 0
    %100 = vmatpush1.bf16.msra.mxu0 0
    %101 = vmatprep.subr.bf16.mxu0 0
    %102 = vmatpush1.bf16.msra.mxu0 0
    %103 = vmatprep.subr.bf16.mxu0 0
    %104 = vmatpush1.bf16.msra.mxu0 0
    %105 = vmatprep.subr.bf16.mxu0 0
    %106 = vmatpush1.bf16.msra.mxu0 0
    %107 = vmatprep.subr.bf16.mxu0 0
    %108 = vmatpush1.bf16.msra.mxu0 0
    %109 = vmatprep.mubr.bf16.mxu0 0
    %110 = vmatmul.mubr.bf16.gmra.mrb[0].mxu0 %v75
    %v111 = vpop.f32.mrb[0].mxu0
    %v112 = vadd.f32 %v56, %v111
    %v113 = vpop.f32.mrb[0].mxu0
    %v114 = vadd.f32 %v60, %v113
    %v115 = vpop.f32.mrb[0].mxu0
    %v116 = vpop.f32.mrb[0].mxu0
    %117 = vdwg.mxu0
    %v118 = vld [vmem:[%s1] sm:$0x3]
    %v119 = vld [vmem:[%s3] sm:$0xff]
    %121 = vset.pattern.permute.xlu0 0
    %122 = vperm.xlu0 %121, %v118
    %v123 = vpop.permute.xlu0 %122
    %v126 = vlaneseq
    %v127 = vshrl.u32 %v126, 7
    %v128 = vsub.s32 0, %v127
    %v129 = vrot.slane %v119, %v128
    %v130 = vlaneseq
    %v131 = vshrl.u32 %v130, 7
    %v132 = vsub.s32 4, %v131
    %v133 = vrot.slane %v119, %v132
    %v136 = vlaneseq
    %v137 = vshrl.u32 %v136, 7
    %v138 = vsub.s32 0, %v137
    %v139 = vrot.slane %v129, %v138
    %v140 = vlaneseq
    %v141 = vshrl.u32 %v140, 7
    %v142 = vsub.s32 0, %v141
    %v143 = vrot.slane %v133, %v142
    %v144 = vmul.f32 %v123, %v139
    %v145 = vmul.f32 %v123, %v143
    %v146 = vadd.f32 %v112, %v144
    %v147 = vadd.f32 %v114, %v145
    %148 = vset.pattern.permute.xlu0 1
    %149 = vperm.xlu0 %148, %v118
    %v150 = vpop.permute.xlu0 %149
    %v152 = vlaneseq
    %v153 = vshrl.u32 %v152, 7
    %v154 = vsub.s32 1, %v153
    %v155 = vrot.slane %v119, %v154
    %v156 = vlaneseq
    %v157 = vshrl.u32 %v156, 7
    %v158 = vsub.s32 5, %v157
    %v159 = vrot.slane %v119, %v158
    %v162 = vlaneseq
    %v163 = vshrl.u32 %v162, 7
    %v164 = vsub.s32 1, %v163
    %v165 = vrot.slane %v155, %v164
    %v166 = vlaneseq
    %v167 = vshrl.u32 %v166, 7
    %v168 = vsub.s32 1, %v167
    %v169 = vrot.slane %v159, %v168
    %v170 = vmul.f32 %v150, %v165
    %v171 = vmul.f32 %v150, %v169
    %v172 = vadd.f32 %v146, %v170
    %v173 = vadd.f32 %v147, %v171
    %174 = vset.pattern.permute.xlu0 2
    %175 = vperm.xlu0 %174, %v118
    %v176 = vpop.permute.xlu0 %175
    %v178 = vlaneseq
    %v179 = vshrl.u32 %v178, 7
    %v180 = vsub.s32 2, %v179
    %v181 = vrot.slane %v119, %v180
    %v182 = vlaneseq
    %v183 = vshrl.u32 %v182, 7
    %v184 = vsub.s32 6, %v183
    %v185 = vrot.slane %v119, %v184
    %v188 = vlaneseq
    %v189 = vshrl.u32 %v188, 7
    %v190 = vsub.s32 2, %v189
    %v191 = vrot.slane %v181, %v190
    %v192 = vlaneseq
    %v193 = vshrl.u32 %v192, 7
    %v194 = vsub.s32 2, %v193
    %v195 = vrot.slane %v185, %v194
    %v196 = vmul.f32 %v176, %v191
    %v197 = vmul.f32 %v176, %v195
    %v198 = vadd.f32 %v172, %v196
    %v199 = vadd.f32 %v173, %v197
    %200 = vset.pattern.permute.xlu0 3
    %201 = vperm.xlu0 %200, %v118
    %v202 = vpop.permute.xlu0 %201
    %v204 = vlaneseq
    %v205 = vshrl.u32 %v204, 7
    %v206 = vsub.s32 3, %v205
    %v207 = vrot.slane %v119, %v206
    %v208 = vlaneseq
    %v209 = vshrl.u32 %v208, 7
    %v210 = vsub.s32 7, %v209
    %v211 = vrot.slane %v119, %v210
    %v214 = vlaneseq
    %v215 = vshrl.u32 %v214, 7
    %v216 = vsub.s32 3, %v215
    %v217 = vrot.slane %v207, %v216
    %v218 = vlaneseq
    %v219 = vshrl.u32 %v218, 7
    %v220 = vsub.s32 3, %v219
    %v221 = vrot.slane %v211, %v220
    %v222 = vmul.f32 %v202, %v217
    %v223 = vmul.f32 %v202, %v221
    %v224 = vadd.f32 %v198, %v222
    %v225 = vadd.f32 %v199, %v223
    %v226 = vmax.f32 %v224, 0.0
    %v227 = vmax.f32 %v225, 0.0
    %v228 = vpack.c.bf16 %v226, %v226
    %v229 = vpack.c.bf16 %v227, %v227
    %v230 = vld [vmem:[#allocation2] sm:$0xff]
    %v231 = vld [vmem:[#allocation2 + $0x8] sm:$0xff]
    %v232 = vld [vmem:[#allocation2 + $0x10] sm:$0xff]
    %v233 = vld [vmem:[#allocation2 + $0x18] sm:$0xff]
    %v234 = vld [vmem:[#allocation2 + $0x20] sm:$0xff]
    %v235 = vld [vmem:[#allocation2 + $0x28] sm:$0xff]
    %v236 = vld [vmem:[#allocation2 + $0x30] sm:$0xff]
    %v237 = vld [vmem:[#allocation2 + $0x38] sm:$0xff]
    %v238 = vld [vmem:[#allocation2 + $0x40] sm:$0xff]
    %v239 = vld [vmem:[#allocation2 + $0x48] sm:$0xff]
    %v240 = vld [vmem:[#allocation2 + $0x50] sm:$0xff]
    %v241 = vld [vmem:[#allocation2 + $0x58] sm:$0xff]
    %v242 = vld [vmem:[#allocation2 + $0x60] sm:$0xff]
    %v243 = vld [vmem:[#allocation2 + $0x68] sm:$0xff]
    %v244 = vld [vmem:[#allocation2 + $0x70] sm:$0xff]
    %v245 = vld [vmem:[#allocation2 + $0x78] sm:$0xff]
    %v246 = vld [vmem:[#allocation2 + $0x80] sm:$0xff]
    %v247 = vld [vmem:[#allocation2 + $0x88] sm:$0xff]
    %v248 = vld [vmem:[#allocation2 + $0x90] sm:$0xff]
    %v249 = vld [vmem:[#allocation2 + $0x98] sm:$0xff]
    %v250 = vld [vmem:[#allocation2 + $0xa0] sm:$0xff]
    %v251 = vld [vmem:[#allocation2 + $0xa8] sm:$0xff]
    %v252 = vld [vmem:[#allocation2 + $0xb0] sm:$0xff]
    %v253 = vld [vmem:[#allocation2 + $0xb8] sm:$0xff]
    %v254 = vld [vmem:[#allocation2 + $0xc0] sm:$0xff]
    %v255 = vld [vmem:[#allocation2 + $0xc8] sm:$0xff]
    %v256 = vld [vmem:[#allocation2 + $0xd0] sm:$0xff]
    %v257 = vld [vmem:[#allocation2 + $0xd8] sm:$0xff]
    %v258 = vld [vmem:[#allocation2 + $0xe0] sm:$0xff]
    %v259 = vld [vmem:[#allocation2 + $0xe8] sm:$0xff]
    %v260 = vld [vmem:[#allocation2 + $0xf0] sm:$0xff]
    %v261 = vld [vmem:[#allocation2 + $0xf8] sm:$0xff]
    %v262 = vld [vmem:[%s6] sm:$0x3]
    %v264 = vlaneseq
    %v265 = vshrl.u32 %v264, 7
    %v266 = vsub.s32 0, %v265
    %v267 = vrot.slane %v262, %v266
    %v268 = vlaneseq
    %v269 = vshrl.u32 %v268, 7
    %v270 = vsub.s32 1, %v269
    %v271 = vrot.slane %v262, %v270
    %v306 = vunpack.c.l.b16 %v230
    %v307 = vunpack.c.h.b16 %v230
    %v308 = vunpack.c.l.b16 %v231
    %v309 = vunpack.c.h.b16 %v231
    %v310 = vunpack.c.l.b16 %v232
    %v311 = vunpack.c.h.b16 %v232
    %v312 = vunpack.c.l.b16 %v233
    %v313 = vunpack.c.h.b16 %v233
    %v314 = vunpack.c.l.b16 %v234
    %v315 = vunpack.c.h.b16 %v234
    %v316 = vunpack.c.l.b16 %v235
    %v317 = vunpack.c.h.b16 %v235
    %v318 = vunpack.c.l.b16 %v236
    %v319 = vunpack.c.h.b16 %v236
    %v320 = vunpack.c.l.b16 %v237
    %v321 = vunpack.c.h.b16 %v237
    %v322 = vunpack.c.l.b16 %v238
    %v323 = vunpack.c.h.b16 %v238
    %v324 = vunpack.c.l.b16 %v239
    %v325 = vunpack.c.h.b16 %v239
    %v326 = vunpack.c.l.b16 %v240
    %v327 = vunpack.c.h.b16 %v240
    %v328 = vunpack.c.l.b16 %v241
    %v329 = vunpack.c.h.b16 %v241
    %v330 = vunpack.c.l.b16 %v242
    %v331 = vunpack.c.h.b16 %v242
    %v332 = vunpack.c.l.b16 %v243
    %v333 = vunpack.c.h.b16 %v243
    %v334 = vunpack.c.l.b16 %v244
    %v335 = vunpack.c.h.b16 %v244
    %v336 = vunpack.c.l.b16 %v245
    %v337 = vunpack.c.h.b16 %v245
    %v338 = vunpack.c.l.b16 %v246
    %v339 = vunpack.c.h.b16 %v246
    %v340 = vunpack.c.l.b16 %v247
    %v341 = vunpack.c.h.b16 %v247
    %v342 = vunpack.c.l.b16 %v248
    %v343 = vunpack.c.h.b16 %v248
    %v344 = vunpack.c.l.b16 %v249
    %v345 = vunpack.c.h.b16 %v249
    %v346 = vunpack.c.l.b16 %v250
    %v347 = vunpack.c.h.b16 %v250
    %v348 = vunpack.c.l.b16 %v251
    %v349 = vunpack.c.h.b16 %v251
    %v350 = vunpack.c.l.b16 %v252
    %v351 = vunpack.c.h.b16 %v252
    %v352 = vunpack.c.l.b16 %v253
    %v353 = vunpack.c.h.b16 %v253
    %v354 = vunpack.c.l.b16 %v254
    %v355 = vunpack.c.h.b16 %v254
    %v356 = vunpack.c.l.b16 %v255
    %v357 = vunpack.c.h.b16 %v255
    %v358 = vunpack.c.l.b16 %v256
    %v359 = vunpack.c.h.b16 %v256
    %v360 = vunpack.c.l.b16 %v257
    %v361 = vunpack.c.h.b16 %v257
    %v362 = vunpack.c.l.b16 %v258
    %v363 = vunpack.c.h.b16 %v258
    %v364 = vunpack.c.l.b16 %v259
    %v365 = vunpack.c.h.b16 %v259
    %v366 = vunpack.c.l.b16 %v260
    %v367 = vunpack.c.h.b16 %v260
    %v368 = vunpack.c.l.b16 %v261
    %v369 = vunpack.c.h.b16 %v261
    %v370 = vpack.c.b16 %v308, %v306
    %v371 = vpack.c.b16 %v309, %v307
    %v372 = vpack.c.b16 %v312, %v310
    %v373 = vpack.c.b16 %v313, %v311
    %v374 = vpack.c.b16 %v316, %v314
    %v375 = vpack.c.b16 %v317, %v315
    %v376 = vpack.c.b16 %v320, %v318
    %v377 = vpack.c.b16 %v321, %v319
    %v378 = vpack.c.b16 %v324, %v322
    %v379 = vpack.c.b16 %v325, %v323
    %v380 = vpack.c.b16 %v328, %v326
    %v381 = vpack.c.b16 %v329, %v327
    %v382 = vpack.c.b16 %v332, %v330
    %v383 = vpack.c.b16 %v333, %v331
    %v384 = vpack.c.b16 %v336, %v334
    %v385 = vpack.c.b16 %v337, %v335
    %v386 = vpack.c.b16 %v340, %v338
    %v387 = vpack.c.b16 %v341, %v339
    %v388 = vpack.c.b16 %v344, %v342
    %v389 = vpack.c.b16 %v345, %v343
    %v390 = vpack.c.b16 %v348, %v346
    %v391 = vpack.c.b16 %v349, %v347
    %v392 = vpack.c.b16 %v352, %v350
    %v393 = vpack.c.b16 %v353, %v351
    %v394 = vpack.c.b16 %v356, %v354
    %v395 = vpack.c.b16 %v357, %v355
    %v396 = vpack.c.b16 %v360, %v358
    %v397 = vpack.c.b16 %v361, %v359
    %v398 = vpack.c.b16 %v364, %v362
    %v399 = vpack.c.b16 %v365, %v363
    %v400 = vpack.c.b16 %v368, %v366
    %v401 = vpack.c.b16 %v369, %v367
    %434 = vmatprep.subr.bf16.mxu0 %v371
    %435 = vmatpush1.bf16.msra.mxu0 %v370
    %436 = vmatprep.subr.bf16.mxu0 %v373
    %437 = vmatpush1.bf16.msra.mxu0 %v372
    %438 = vmatprep.subr.bf16.mxu0 %v375
    %439 = vmatpush1.bf16.msra.mxu0 %v374
    %440 = vmatprep.subr.bf16.mxu0 %v377
    %441 = vmatpush1.bf16.msra.mxu0 %v376
    %442 = vmatprep.subr.bf16.mxu0 %v379
    %443 = vmatpush1.bf16.msra.mxu0 %v378
    %444 = vmatprep.subr.bf16.mxu0 %v381
    %445 = vmatpush1.bf16.msra.mxu0 %v380
    %446 = vmatprep.subr.bf16.mxu0 %v383
    %447 = vmatpush1.bf16.msra.mxu0 %v382
    %448 = vmatprep.subr.bf16.mxu0 %v385
    %449 = vmatpush1.bf16.msra.mxu0 %v384
    %450 = vmatprep.subr.bf16.mxu0 %v387
    %451 = vmatpush1.bf16.msra.mxu0 %v386
    %452 = vmatprep.subr.bf16.mxu0 %v389
    %453 = vmatpush1.bf16.msra.mxu0 %v388
    %454 = vmatprep.subr.bf16.mxu0 %v391
    %455 = vmatpush1.bf16.msra.mxu0 %v390
    %456 = vmatprep.subr.bf16.mxu0 %v393
    %457 = vmatpush1.bf16.msra.mxu0 %v392
    %458 = vmatprep.subr.bf16.mxu0 %v395
    %459 = vmatpush1.bf16.msra.mxu0 %v394
    %460 = vmatprep.subr.bf16.mxu0 %v397
    %461 = vmatpush1.bf16.msra.mxu0 %v396
    %462 = vmatprep.subr.bf16.mxu0 %v399
    %463 = vmatpush1.bf16.msra.mxu0 %v398
    %464 = vmatprep.subr.bf16.mxu0 %v401
    %465 = vmatpush1.bf16.msra.mxu0 %v400
    %466 = vmatprep.mubr.bf16.mxu0 %v229
    %467 = vmatmul.mubr.bf16.gmra.mrb[0].mxu0 %v228
    %v468 = vpop.f32.mrb[0].mxu0
    %v469 = vadd.f32 %v267, %v468
    %v470 = vpop.f32.mrb[0].mxu0
    %v471 = vadd.f32 %v271, %v470
    %v472 = vpop.f32.mrb[0].mxu0
    %v473 = vpop.f32.mrb[0].mxu0
    %474 = vdwg.mxu0
    %v475 = vmax.f32 %v469, 0.0
    %v476 = vmax.f32 %v471, 0.0
    %v477 = vpack.c.bf16 %v475, %v475
    %v478 = vpack.c.bf16 %v476, %v476
    %v479 = vld [vmem:[%s7] sm:$0xf]
    %v480 = vld [vmem:[%s7 + $0x4] sm:$0xf]
    %v481 = vld [vmem:[%s7 + $0x8] sm:$0xf]
    %v482 = vld [vmem:[%s7 + $0xc] sm:$0xf]
    %v483 = vld [vmem:[%s7 + $0x10] sm:$0xf]
    %v484 = vld [vmem:[%s7 + $0x14] sm:$0xf]
    %v485 = vld [vmem:[%s7 + $0x18] sm:$0xf]
    %v486 = vld [vmem:[%s7 + $0x1c] sm:$0xf]
    %v487 = vld [vmem:[%s7 + $0x20] sm:$0xf]
    %v488 = vld [vmem:[%s7 + $0x24] sm:$0xf]
    %v489 = vld [vmem:[%s7 + $0x28] sm:$0xf]
    %v490 = vld [vmem:[%s7 + $0x2c] sm:$0xf]
    %v491 = vld [vmem:[%s7 + $0x30] sm:$0xf]
    %v492 = vld [vmem:[%s7 + $0x34] sm:$0xf]
    %v493 = vld [vmem:[%s7 + $0x38] sm:$0xf]
    %v494 = vld [vmem:[%s7 + $0x3c] sm:$0xf]
    %v495 = vld [vmem:[%s7 + $0x40] sm:$0xf]
    %v496 = vld [vmem:[%s7 + $0x44] sm:$0xf]
    %v497 = vld [vmem:[%s7 + $0x48] sm:$0xf]
    %v498 = vld [vmem:[%s7 + $0x4c] sm:$0xf]
    %v499 = vld [vmem:[%s7 + $0x50] sm:$0xf]
    %v500 = vld [vmem:[%s7 + $0x54] sm:$0xf]
    %v501 = vld [vmem:[%s7 + $0x58] sm:$0xf]
    %v502 = vld [vmem:[%s7 + $0x5c] sm:$0xf]
    %v503 = vld [vmem:[%s7 + $0x60] sm:$0xf]
    %v504 = vld [vmem:[%s7 + $0x64] sm:$0xf]
    %v505 = vld [vmem:[%s7 + $0x68] sm:$0xf]
    %v506 = vld [vmem:[%s7 + $0x6c] sm:$0xf]
    %v507 = vld [vmem:[%s7 + $0x70] sm:$0xf]
    %v508 = vld [vmem:[%s7 + $0x74] sm:$0xf]
    %v509 = vld [vmem:[%s7 + $0x78] sm:$0xf]
    %v510 = vld [vmem:[%s7 + $0x7c] sm:$0xf]
    %v511 = vld [vmem:[%s8] sm:$0x1]
    %v513 = vlaneseq
    %v514 = vshrl.u32 %v513, 7
    %v515 = vsub.s32 0, %v514
    %v516 = vrot.slane %v511, %v515
    %v550 = vunpack.c.l.b16 %v479
    %v551 = vunpack.c.l.b16 %v480
    %v552 = vunpack.c.l.b16 %v481
    %v553 = vunpack.c.l.b16 %v482
    %v554 = vunpack.c.l.b16 %v483
    %v555 = vunpack.c.l.b16 %v484
    %v556 = vunpack.c.l.b16 %v485
    %v557 = vunpack.c.l.b16 %v486
    %v558 = vunpack.c.l.b16 %v487
    %v559 = vunpack.c.l.b16 %v488
    %v560 = vunpack.c.l.b16 %v489
    %v561 = vunpack.c.l.b16 %v490
    %v562 = vunpack.c.l.b16 %v491
    %v563 = vunpack.c.l.b16 %v492
    %v564 = vunpack.c.l.b16 %v493
    %v565 = vunpack.c.l.b16 %v494
    %v566 = vunpack.c.l.b16 %v495
    %v567 = vunpack.c.l.b16 %v496
    %v568 = vunpack.c.l.b16 %v497
    %v569 = vunpack.c.l.b16 %v498
    %v570 = vunpack.c.l.b16 %v499
    %v571 = vunpack.c.l.b16 %v500
    %v572 = vunpack.c.l.b16 %v501
    %v573 = vunpack.c.l.b16 %v502
    %v574 = vunpack.c.l.b16 %v503
    %v575 = vunpack.c.l.b16 %v504
    %v576 = vunpack.c.l.b16 %v505
    %v577 = vunpack.c.l.b16 %v506
    %v578 = vunpack.c.l.b16 %v507
    %v579 = vunpack.c.l.b16 %v508
    %v580 = vunpack.c.l.b16 %v509
    %v581 = vunpack.c.l.b16 %v510
    %v582 = vpack.c.b16 %v551, %v550
    %v583 = vpack.c.b16 %v553, %v552
    %v584 = vpack.c.b16 %v555, %v554
    %v585 = vpack.c.b16 %v557, %v556
    %v586 = vpack.c.b16 %v559, %v558
    %v587 = vpack.c.b16 %v561, %v560
    %v588 = vpack.c.b16 %v563, %v562
    %v589 = vpack.c.b16 %v565, %v564
    %v590 = vpack.c.b16 %v567, %v566
    %v591 = vpack.c.b16 %v569, %v568
    %v592 = vpack.c.b16 %v571, %v570
    %v593 = vpack.c.b16 %v573, %v572
    %v594 = vpack.c.b16 %v575, %v574
    %v595 = vpack.c.b16 %v577, %v576
    %v596 = vpack.c.b16 %v579, %v578
    %v597 = vpack.c.b16 %v581, %v580
    %614 = vmatprep.subr.bf16.mxu0 0
    %615 = vmatpush1.bf16.msra.mxu0 %v582
    %616 = vmatprep.subr.bf16.mxu0 0
    %617 = vmatpush1.bf16.msra.mxu0 %v583
    %618 = vmatprep.subr.bf16.mxu0 0
    %619 = vmatpush1.bf16.msra.mxu0 %v584
    %620 = vmatprep.subr.bf16.mxu0 0
    %621 = vmatpush1.bf16.msra.mxu0 %v585
    %622 = vmatprep.subr.bf16.mxu0 0
    %623 = vmatpush1.bf16.msra.mxu0 %v586
    %624 = vmatprep.subr.bf16.mxu0 0
    %625 = vmatpush1.bf16.msra.mxu0 %v587
    %626 = vmatprep.subr.bf16.mxu0 0
    %627 = vmatpush1.bf16.msra.mxu0 %v588
    %628 = vmatprep.subr.bf16.mxu0 0
    %629 = vmatpush1.bf16.msra.mxu0 %v589
    %630 = vmatprep.subr.bf16.mxu0 0
    %631 = vmatpush1.bf16.msra.mxu0 %v590
    %632 = vmatprep.subr.bf16.mxu0 0
    %633 = vmatpush1.bf16.msra.mxu0 %v591
    %634 = vmatprep.subr.bf16.mxu0 0
    %635 = vmatpush1.bf16.msra.mxu0 %v592
    %636 = vmatprep.subr.bf16.mxu0 0
    %637 = vmatpush1.bf16.msra.mxu0 %v593
    %638 = vmatprep.subr.bf16.mxu0 0
    %639 = vmatpush1.bf16.msra.mxu0 %v594
    %640 = vmatprep.subr.bf16.mxu0 0
    %641 = vmatpush1.bf16.msra.mxu0 %v595
    %642 = vmatprep.subr.bf16.mxu0 0
    %643 = vmatpush1.bf16.msra.mxu0 %v596
    %644 = vmatprep.subr.bf16.mxu0 0
    %645 = vmatpush1.bf16.msra.mxu0 %v597
    %646 = vmatprep.mubr.bf16.mxu0 %v478
    %647 = vmatmul.mubr.bf16.gmra.mrb[0].mxu0 %v477
    %v648 = vpop.f32.mrb[0].mxu0
    %v649 = vadd.f32 %v516, %v648
    %v650 = vpop.f32.mrb[0].mxu0
    %v651 = vpop.f32.mrb[0].mxu0
    %v652 = vpop.f32.mrb[0].mxu0
    %653 = vdwg.mxu0
    %vm654 = vcmask 58368
    %655 = vst.msk [vmem:[%s9] sm:$0x3] %vm654, %v649
    // Predicated region
    $region42: #{critic_forward_prepared.1} parent=1 // pred_check
      _
    $region43: #{critic_forward_prepared.1} parent=1 // pred_check_branch
      %657 = sbr.rel (0) target = $region45
    $region44: #{critic_forward_prepared.1} parent=1 // pred_region
      _
    $region45: #{critic_forward_prepared.1} parent=1 // pred_fallthru
      _
    // Predicated region
    $region46: #{critic_forward_prepared.1} parent=1 // pred_check
      _
    $region47: #{critic_forward_prepared.1} parent=1 // pred_check_branch
      %659 = sbr.rel (0) target = $region49
    $region48: #{critic_forward_prepared.1} parent=1 // pred_region
      _
    $region49: #{critic_forward_prepared.1} parent=1 // pred_fallthru
      _
    %660 = vsyncpa [#allocation3], 1

</llo_original>
